<compile_context>
chip_gen: v6e
topology: v6e:2x2x1
jax: 0.10.0
libtpu: 0.0.40
codegen_flags: <defaults>
</compile_context>

<pallas_src>
import functools

import jax
import jax.numpy as jnp
from jax.experimental import pallas as pl
from jax.experimental.pallas import tpu as pltpu


_IGNORE_INDEX = -100  # PyTorch NLLLoss / NLLLoss2d default


def _round_up(x, m):
    return ((x + m - 1) // m) * m


def _ce2d_kernel(logits_ref, tgt_ref, out_ref, *, hw, tile_p, tiles_per_split,
                 full_tiles, ignore_index, needs_tail):
    """One grid step over a (C, tile_p) logits slab + (1, tile_p) target slab.

    out_ref is a (2, tile_p) per-(batch, split) resident accumulator:
      row 0 = sum of -log p[target] over this split's pixel tiles,
      row 1 = count of valid (in-bounds, non-ignored) pixels.
    """
    s = pl.program_id(1)
    i = pl.program_id(2)

    @pl.when(i == 0)
    def _():
        out_ref[...] = jnp.zeros_like(out_ref)

    x = logits_ref[...].astype(jnp.float32)            # (C, tp)
    t = tgt_ref[...].astype(jnp.int32)                 # (1, tp)
    C, tp = x.shape

    # Numerically stable log-softmax pieces along the channel (sublane) axis.
    # logp is never materialized: picked log-prob = shifted[target] - lse.
    m = jnp.max(x, axis=0, keepdims=True)                              # (1, tp)
    shifted = x - m                                                    # (C, tp)
    lse = jnp.log(jnp.sum(jnp.exp(shifted), axis=0, keepdims=True))    # (1, tp)

    # One-hot pick as a single multiply-accumulate pass over the (C, tp) slab.
    cls = jax.lax.broadcasted_iota(jnp.int32, (C, tp), 0)
    tgt_shift = jnp.sum(shifted * (cls == t).astype(jnp.float32),
                        axis=0, keepdims=True)                         # (1, tp)
    nll = lse - tgt_shift                                              # (1, tp)

    not_ign = t != ignore_index                                        # (1, tp)
    ign_mask = not_ign.astype(jnp.float32)

    def accum(loss_row, cnt_row):
        out_ref[0:1, :] += loss_row
        out_ref[1:2, :] += cnt_row

    if needs_tail:
        g = s * tiles_per_split + i        # global pixel-tile index (unclamped)

        @pl.when(g < full_tiles)
        def _():
            # Full, fully in-bounds tile: no lane mask needed. nll is finite
            # for finite logits (even for ignored targets), so multiply-mask
            # is safe and cheaper than jnp.where.
            accum(nll * ign_mask, ign_mask)

        @pl.when(g >= full_tiles)
        def _():
            # Partial / clamped overflow tile: garbage lanes may carry NaN/Inf,
            # so mask with jnp.where BEFORE accumulating.
            lane = jax.lax.broadcasted_iota(jnp.int32, (1, tp), 1) + g * tile_p
            valid = (lane < hw) & not_ign
            accum(jnp.where(valid, nll, 0.0), valid.astype(jnp.float32))
    else:
        accum(nll * ign_mask, ign_mask)


def cross_entropy_loss_2d(outputs, targets, *, tile_p=None,
                          ignore_index=_IGNORE_INDEX):
    """outputs: (N, C, H, W) float logits; targets: (N, H, W) int class indices.

    Returns scalar loss matching NLLLoss2d()(F.log_softmax(outputs, dim=1), targets)
    (unweighted mean; ignore_index pixels excluded from numerator and denominator).
    """
    # TODO(synk): optional per-class `weight` (and weighted-mean denominator) of
    # nn.NLLLoss2d is not implemented; only the default weight=None path is covered.
    N, C, H, W = outputs.shape
    HW = H * W

    try:
        vmem_bytes = int(pltpu.get_tpu_info().vmem_capacity_bytes)
    except Exception:
        vmem_bytes = 64 * 1024 * 1024   # conservative lower bound (v7x per-core VMEM)

    # Scoped VMEM limit: ~3/4 of physical (48 MiB on v7x, 96 MiB on v5e/v6e).
    vmem_limit = int(min(vmem_bytes * 3 // 4, 100 * 1024 * 1024))

    itemsize = jnp.dtype(outputs.dtype).itemsize
    c_pad = _round_up(C, 8)
    if tile_p is None:
        # Budget ~3/4 of the scoped limit across: double-buffered logits and
        # target blocks, the resident (2, tile_p) accumulator, and ~5 live
        # (c_pad, tile_p) f32 temporaries inside the kernel body.
        budget = (vmem_limit * 3) // 4
        per_lane = (2 * c_pad * itemsize    # logits double-buffer
                    + 2 * 8 * 4             # int32 targets (sublane-padded) x2
                    + 2 * 8 * 4             # (2, tile_p) f32 output (padded) x2
                    + 5 * c_pad * 4)        # in-kernel f32 temporaries
        tile_p = budget // per_lane
    tile_p = (max(128, min(int(tile_p), 131072)) // 128) * 128
    tile_p = min(tile_p, _round_up(HW, 128))

    n_tiles = (HW + tile_p - 1) // tile_p
    # Second "parallel" axis splits the pixel tiles across the 2 TensorCores on
    # v7x even when N == 1; negligible overhead on single-TC v5e/v6e.
    split = 2 if n_tiles >= 2 else 1
    tiles_per_split = (n_tiles + split - 1) // split
    needs_tail = (split * tiles_per_split * tile_p != HW)
    full_tiles = HW // tile_p              # tiles that are complete and in-bounds

    logits = outputs.reshape(N, C, HW)                  # free reshape, no transpose
    if not jnp.issubdtype(targets.dtype, jnp.integer):
        targets = targets.astype(jnp.int32)
    tgt = targets.reshape(N, 1, HW)        # keep incoming int dtype; widen in-kernel

    def in_idx_map(n, s, i):
        g = s * tiles_per_split + i
        if split * tiles_per_split > n_tiles:
            # Clamp the (fully lane-masked) overflow tile onto the last real tile.
            g = jnp.minimum(g, n_tiles - 1)
        return (n, 0, g)

    kernel = functools.partial(
        _ce2d_kernel, hw=HW, tile_p=tile_p, tiles_per_split=tiles_per_split,
        full_tiles=full_tiles, ignore_index=ignore_index, needs_tail=needs_tail)

    partial = pl.pallas_call(
        kernel,
        out_shape=jax.ShapeDtypeStruct((N, split, 2, tile_p), jnp.float32),
        grid_spec=pltpu.PrefetchScalarGridSpec(
            num_scalar_prefetch=0,
            grid=(N, split, tiles_per_split),
            in_specs=[
                pl.BlockSpec((pl.Squeezed(), C, tile_p), in_idx_map),
                pl.BlockSpec((pl.Squeezed(), 1, tile_p), in_idx_map),
            ],
            out_specs=pl.BlockSpec(
                (pl.Squeezed(), pl.Squeezed(), 2, tile_p),
                lambda n, s, i: (n, s, 0, 0)),
        ),
        compiler_params=pltpu.CompilerParams(
            dimension_semantics=("parallel", "parallel", "arbitrary"),
            vmem_limit_bytes=vmem_limit,
        ),
    )(logits, tgt)

    # Final reduce + mean in the wrapper (f32 is fine up to ~2^24 valid pixels).
    loss_sum = jnp.sum(partial[:, :, 0, :])
    valid_cnt = jnp.sum(partial[:, :, 1, :])
    return loss_sum / valid_cnt


def _reference(outputs, targets, *, ignore_index=_IGNORE_INDEX):
    # pure-JAX reference of F.nll_loss(F.log_softmax(outputs, dim=1), targets)
    logp = jax.nn.log_softmax(outputs.astype(jnp.float32), axis=1)      # (N,C,H,W)
    safe_t = jnp.where(targets == ignore_index, 0, targets).astype(jnp.int32)
    picked = jnp.take_along_axis(logp, safe_t[:, None, :, :], axis=1)[:, 0]
    valid = targets != ignore_index
    return -jnp.sum(jnp.where(valid, picked, 0.0)) / jnp.sum(valid)


if __name__ == "__main__":
    key = jax.random.PRNGKey(0)
    k1, k2, k3, k4, k5, k6 = jax.random.split(key, 6)

    # Case 1: plain (no ignored pixels), N=2, C=4, 16x16.
    N, C, H, W = 2, 4, 16, 16
    outputs = jax.random.normal(k1, (N, C, H, W), dtype=jnp.float32)
    targets = jax.random.randint(k2, (N, H, W), 0, C, dtype=jnp.int32)
    loss = jax.block_until_ready(cross_entropy_loss_2d(outputs, targets))
    ref = _reference(outputs, targets)
    assert jnp.allclose(loss, ref, atol=1e-5, rtol=1e-5), (loss, ref)

    # Case 2: ignore_index path (PyTorch NLLLoss default ignore_index=-100).
    mask = jax.random.bernoulli(k3, 0.25, (N, H, W))
    targets_ig = jnp.where(mask, jnp.int32(-100), targets)
    loss_ig = jax.block_until_ready(cross_entropy_loss_2d(outputs, targets_ig))
    ref_ig = _reference(outputs, targets_ig)
    assert jnp.allclose(loss_ig, ref_ig, atol=1e-5, rtol=1e-5), (loss_ig, ref_ig)

    # Case 3: multi-tile + core-split + partial tail + clamped overflow tile
    # (explicit tile_p=128 so HW=576 -> 5 real tiles, split=2, one masked tile).
    N3, C3, H3, W3 = 1, 5, 24, 24
    outputs3 = jax.random.normal(k4, (N3, C3, H3, W3), dtype=jnp.float32)
    targets3 = jax.random.randint(k5, (N3, H3, W3), 0, C3, dtype=jnp.int32)
    mask3 = jax.random.bernoulli(k6, 0.2, (N3, H3, W3))
    targets3 = jnp.where(mask3, jnp.int32(-100), targets3)
    loss3 = jax.block_until_ready(
        cross_entropy_loss_2d(outputs3, targets3, tile_p=128))
    ref3 = _reference(outputs3, targets3)
    assert jnp.allclose(loss3, ref3, atol=1e-5, rtol=1e-5), (loss3, ref3)

    print("KERNEL_OK")
</pallas_src>

<mosaic_0001>
module attributes {stable_mosaic.version = 11 : i64} {
  func.func @_ce2d_kernel(%arg0: i32, %arg1: i32, %arg2: i32, %arg3: memref<1x4x256xf32, #tpu.memory_space<vmem>>, %arg4: memref<1x1x256xi32, #tpu.memory_space<vmem>>, %arg5: memref<1x1x2x256xf32, #tpu.memory_space<vmem>>) attributes {dimension_semantics = [#tpu.dimension_semantics<parallel>, #tpu.dimension_semantics<parallel>, #tpu.dimension_semantics<arbitrary>], iteration_bounds = array<i64: 2, 1, 1>, scalar_prefetch = 0 : i64, scratch_operands = 0 : i64, tpu.core_type = #tpu.core_type<tc>, window_params = [{transform_indices = @transform_0, window_bounds = array<i64: 1, 4, 256>}, {transform_indices = @transform_1, window_bounds = array<i64: 1, 1, 256>}, {transform_indices = @transform_2, window_bounds = array<i64: 1, 1, 2, 256>}]} {
    %c0_i32 = arith.constant 0 : i32
    %0 = arith.cmpi eq, %arg2, %c0_i32 : i32
    %1 = arith.extui %0 : i1 to i32
    %c0_i32_0 = arith.constant 0 : i32
    %2 = arith.cmpi ne, %1, %c0_i32_0 : i32
    scf.if %2 {
      %cst_23 = arith.constant 0.000000e+00 : f32
      %41 = vector.broadcast %cst_23 : f32 to vector<2x256xf32>
      %c0_24 = arith.constant 0 : index
      %c0_25 = arith.constant 0 : index
      %c0_26 = arith.constant 0 : index
      %c0_27 = arith.constant 0 : index
      %42 = vector.load %arg5[%c0_24, %c0_25, %c0_26, %c0_27] : memref<1x1x2x256xf32, #tpu.memory_space<vmem>>, vector<1x1x2x256xf32>
      %43 = vector.shape_cast %42 : vector<1x1x2x256xf32> to vector<2x256xf32>
      %44 = vector.shape_cast %41 : vector<2x256xf32> to vector<1x1x2x256xf32>
      tpu.vector_store %arg5[%c0_24, %c0_25, %c0_26, %c0_27], %44 {strides = array<i32>} : memref<1x1x2x256xf32, #tpu.memory_space<vmem>>, vector<1x1x2x256xf32>,
    } else {
    }
    %c0 = arith.constant 0 : index
    %c0_1 = arith.constant 0 : index
    %c0_2 = arith.constant 0 : index
    %3 = vector.load %arg3[%c0, %c0_1, %c0_2] : memref<1x4x256xf32, #tpu.memory_space<vmem>>, vector<1x4x256xf32>
    %4 = vector.shape_cast %3 : vector<1x4x256xf32> to vector<4x256xf32>
    %c0_3 = arith.constant 0 : index
    %c0_4 = arith.constant 0 : index
    %c0_5 = arith.constant 0 : index
    %5 = vector.load %arg4[%c0_3, %c0_4, %c0_5] : memref<1x1x256xi32, #tpu.memory_space<vmem>>, vector<1x1x256xi32>
    %6 = vector.shape_cast %5 : vector<1x1x256xi32> to vector<1x256xi32>
    %cst = arith.constant dense<0xFF800000> : vector<256xf32>
    %7 = vector.multi_reduction <maximumf>, %4, %cst [0] : vector<4x256xf32> to vector<256xf32>
    %8 = vector.shape_cast %7 : vector<256xf32> to vector<1x256xf32>
    %9 = vector.broadcast %8 : vector<1x256xf32> to vector<4x256xf32>
    %10 = arith.subf %4, %9 : vector<4x256xf32>
    %11 = math.exp %10 : vector<4x256xf32>
    %cst_6 = arith.constant dense<0.000000e+00> : vector<256xf32>
    %12 = vector.multi_reduction <add>, %11, %cst_6 [0] : vector<4x256xf32> to vector<256xf32>
    %13 = vector.shape_cast %12 : vector<256xf32> to vector<1x256xf32>
    %14 = math.log %13 : vector<1x256xf32>
    %15 = tpu.iota {dimensions = array<i32: 0>} : vector<4x256xi32>
    %16 = vector.broadcast %6 : vector<1x256xi32> to vector<4x256xi32>
    %17 = arith.cmpi eq, %15, %16 : vector<4x256xi32>
    %18 = arith.extui %17 : vector<4x256xi1> to vector<4x256xi32>
    %19 = arith.sitofp %18 : vector<4x256xi32> to vector<4x256xf32>
    %20 = arith.mulf %10, %19 : vector<4x256xf32>
    %cst_7 = arith.constant dense<0.000000e+00> : vector<256xf32>
    %21 = vector.multi_reduction <add>, %20, %cst_7 [0] : vector<4x256xf32> to vector<256xf32>
    %22 = vector.shape_cast %21 : vector<256xf32> to vector<1x256xf32>
    %23 = arith.subf %14, %22 : vector<1x256xf32>
    %c-100_i32 = arith.constant -100 : i32
    %24 = vector.broadcast %c-100_i32 : i32 to vector<1x256xi32>
    %25 = arith.cmpi ne, %6, %24 : vector<1x256xi32>
    %26 = arith.extui %25 : vector<1x256xi1> to vector<1x256xi32>
    %27 = arith.sitofp %26 : vector<1x256xi32> to vector<1x256xf32>
    %28 = arith.mulf %23, %27 : vector<1x256xf32>
    %c0_8 = arith.constant 0 : index
    %c0_9 = arith.constant 0 : index
    %c0_10 = arith.constant 0 : index
    %c0_11 = arith.constant 0 : index
    %29 = vector.load %arg5[%c0_8, %c0_9, %c0_10, %c0_11] : memref<1x1x2x256xf32, #tpu.memory_space<vmem>>, vector<1x1x1x256xf32>
    %30 = vector.shape_cast %29 : vector<1x1x1x256xf32> to vector<1x256xf32>
    %31 = arith.addf %30, %28 : vector<1x256xf32>
    %c0_12 = arith.constant 0 : index
    %c0_13 = arith.constant 0 : index
    %c0_14 = arith.constant 0 : index
    %c0_15 = arith.constant 0 : index
    %32 = vector.load %arg5[%c0_12, %c0_13, %c0_14, %c0_15] : memref<1x1x2x256xf32, #tpu.memory_space<vmem>>, vector<1x1x1x256xf32>
    %33 = vector.shape_cast %32 : vector<1x1x1x256xf32> to vector<1x256xf32>
    %34 = vector.shape_cast %31 : vector<1x256xf32> to vector<1x1x1x256xf32>
    tpu.vector_store %arg5[%c0_12, %c0_13, %c0_14, %c0_15], %34 {strides = array<i32>} : memref<1x1x2x256xf32, #tpu.memory_space<vmem>>, vector<1x1x1x256xf32>,
    %c0_16 = arith.constant 0 : index
    %c0_17 = arith.constant 0 : index
    %c1 = arith.constant 1 : index
    %c0_18 = arith.constant 0 : index
    %35 = vector.load %arg5[%c0_16, %c0_17, %c1, %c0_18] : memref<1x1x2x256xf32, #tpu.memory_space<vmem>>, vector<1x1x1x256xf32>
    %36 = vector.shape_cast %35 : vector<1x1x1x256xf32> to vector<1x256xf32>
    %37 = arith.addf %36, %27 : vector<1x256xf32>
    %c0_19 = arith.constant 0 : index
    %c0_20 = arith.constant 0 : index
    %c1_21 = arith.constant 1 : index
    %c0_22 = arith.constant 0 : index
    %38 = vector.load %arg5[%c0_19, %c0_20, %c1_21, %c0_22] : memref<1x1x2x256xf32, #tpu.memory_space<vmem>>, vector<1x1x1x256xf32>
    %39 = vector.shape_cast %38 : vector<1x1x1x256xf32> to vector<1x256xf32>
    %40 = vector.shape_cast %37 : vector<1x256xf32> to vector<1x1x1x256xf32>
    tpu.vector_store %arg5[%c0_19, %c0_20, %c1_21, %c0_22], %40 {strides = array<i32>} : memref<1x1x2x256xf32, #tpu.memory_space<vmem>>, vector<1x1x1x256xf32>,
    return
  }
  func.func @transform_0(%arg0: i32, %arg1: i32, %arg2: i32) -> (i32, i32, i32) {
    %c1_i32 = arith.constant 1 : i32
    %0 = arith.muli %arg1, %c1_i32 : i32
    %1 = arith.addi %0, %arg2 : i32
    %c0_i32 = arith.constant 0 : i32
    %c0_i32_0 = arith.constant 0 : i32
    return %arg0, %c0_i32, %1 : i32, i32, i32
  }
  func.func @transform_1(%arg0: i32, %arg1: i32, %arg2: i32) -> (i32, i32, i32) {
    %c1_i32 = arith.constant 1 : i32
    %0 = arith.muli %arg1, %c1_i32 : i32
    %1 = arith.addi %0, %arg2 : i32
    %c0_i32 = arith.constant 0 : i32
    %c0_i32_0 = arith.constant 0 : i32
    return %arg0, %c0_i32, %1 : i32, i32, i32
  }
  func.func @transform_2(%arg0: i32, %arg1: i32, %arg2: i32) -> (i32, i32, i32, i32) {
    %c0_i32 = arith.constant 0 : i32
    %c0_i32_0 = arith.constant 0 : i32
    %c0_i32_1 = arith.constant 0 : i32
    return %arg0, %arg1, %c0_i32, %c0_i32_0 : i32, i32, i32, i32
  }
}

</mosaic_0001>

<llo_original>
// kernel: tpu_custom_call.1
$region0: #{tpu_custom_call.1}
  #allocation0 [shape = 'u32[]', space=smem, size = 0x4, offset = 0x4, fixed_abs, tag = 'smem constant byte address 0x4 - core index']
  #allocation1 [shape = 'u32[144,128]{1,0:T(1,128)}', space=vmem, size = 0x12000, scoped, tag = 'internal scratch']
  %s0 = inlined_call_operand.hbm [shape: f32[2,4,256], index: 0, kind: input, shape index: {}]
  %s1 = inlined_call_operand.hbm [shape: s32[2,1,256], index: 1, kind: input, shape index: {}]
  %s2 = inlined_call_operand.hbm [shape: f32[2,1,2,256], index: 2, kind: output, shape index: {}]
  %s3 = sld [smem:[#allocation0]]
  $region53: #{tpu_custom_call.1} parent=0
    _
  %s5 = ssub.s32 1, %s3
  %s6 = scalar_select 0, %s5, %s3
  $region1: #{tpu_custom_call.1} parent=0
    #allocation2 [shape = 'u8[8192]{0}', space=vmem, size = 0x2000, scoped, tag = 'input window, operand 0']
    #allocation3 [shape = 's32[2]{0}', space=sflag, size = 0x8, scoped, tag = 'scoped memory for tpu_custom_call.1']
    #allocation4 [shape = 's32[2]{0}', space=sflag, size = 0x8, scoped, tag = 'scoped memory for tpu_custom_call.1']
    #allocation5 [shape = 'u8[2048]{0}', space=vmem, size = 0x800, scoped, tag = 'input window, operand 1']
    #allocation6 [shape = 's32[2]{0}', space=sflag, size = 0x8, scoped, tag = 'scoped memory for tpu_custom_call.1']
    #allocation7 [shape = 'u8[4096]{0}', space=vmem, size = 0x1000, scoped, tag = 'output window, operand 0']
    %7 = vsyncpa [#allocation3], 0
    %s8 = scalar_lea.sflag [#allocation3], 1
    %9 = vsyncpa %s8, 0
    %10 = vsyncpa [#allocation6], 0
    %s11 = scalar_lea.sflag [#allocation6], 1
    %12 = vsyncpa %s11, 0
    %13 = vsyncpa [#allocation4], 0
    %s14 = scalar_lea.sflag [#allocation4], 1
    %15 = vsyncpa %s14, 0
    loop: start=0, step=1, limit=4
    $region2: #{tpu_custom_call.1} parent=1 // loop_pre_header
      _
    $region3: #{tpu_custom_call.1} parent=1 // loop_header
      %s17 = sphi 0, %s21
      %p18 = scmp.ge.s32.totalorder %s17, 4
      %s24 = sphi 0, %s43
      %s25 = sphi 0, %s39
      %s26 = sphi 0, %s35
      %s27 = sphi 0, %s24
      %s28 = sphi 0, %s25
      %s29 = sphi 0, %s26
      %s30 = sphi 0, %s27
      %s31 = sphi 0, %s28
      %s32 = sphi 0, %s29
      %s50 = sphi 0, %s52
      %s53 = sphi 0, %s50
      %s54 = sphi 0, %s53
      %s70 = sphi 0, %s54
      %s80 = sphi 0, %s82
      %s83 = sphi 0, %s80
      %s84 = sphi 0, %s83
      %s100 = sphi 0, %s84
      %s108 = sphi 0, %s110
      %s111 = sphi 0, %s108
      %s112 = sphi 0, %s111
      %s128 = sphi 0, %s112
    $region4: #{tpu_custom_call.1} parent=1 // loop_header_branch
      %20 = sbr.rel (%p18) target = $region8
    $region5: #{tpu_custom_call.1} parent=1 // loop_body
      %s22 = ssub.s32 %s17, 1
      %s23 = ssub.s32 %s17, 2
      %s33 = sadd.s32 1, %s26
      %p34 = scmp.ge.s32.totalorder %s33, 1
      %s35 = scalar_select %p34, 0, %s33
      %s36 = sadd.s32 1, %s25
      %s37 = scalar_select %p34, %s36, %s25
      %p38 = scmp.ge.s32.totalorder %s37, 1
      %s39 = scalar_select %p38, 0, %s37
      %s40 = sadd.s32 1, %s24
      %s41 = scalar_select %p38, %s40, %s24
      %p42 = scmp.ge.s32.totalorder %s41, 2
      %s43 = scalar_select %p42, 0, %s41
      %s44 = sadd.s32 %s25, %s26
      %s45 = sadd.s32 %s39, %s35
      %s46 = ssub.s32 %s24, %s43
      %s47 = ssub.s32 %s44, %s45
      %s48 = sor.u32 %s46, %s47
      %p49 = scmp.eq.s32.totalorder %s48, 0
      %s51 = sadd.s32 %s50, 1
      %s52 = scalar_select %p49, %s50, %s51
      %p55 = pneg %p49
      %p56 = scmp.eq.s32.totalorder %s17, 1
      %p57 = por %p55, %p56
      %p58 = scmp.ne.s32.totalorder %s50, %s53
      %p59 = scmp.eq.s32.totalorder %s17, 0
      %p60 = por %p58, %p59
      %p61 = scmp.ne.s32.totalorder %s50, %s53
      %p62 = scmp.eq.s32.totalorder %s22, 1
      %p63 = por %p61, %p62
      %p64 = scmp.ne.s32.totalorder %s53, %s54
      %p65 = scmp.eq.s32.totalorder %s22, 0
      %p66 = por %p64, %p65
      %p67 = scmp.ne.s32.totalorder %s53, %s54
      %p68 = scmp.eq.s32.totalorder %s23, 1
      %p69 = por %p67, %p68
      %p71 = scmp.ne.s32.totalorder %s54, %s70
      %p72 = scmp.eq.s32.totalorder %s23, 0
      %p73 = por %p71, %p72
      %s74 = sadd.s32 %s25, %s26
      %s75 = sadd.s32 %s39, %s35
      %s76 = ssub.s32 %s24, %s43
      %s77 = ssub.s32 %s74, %s75
      %s78 = sor.u32 %s76, %s77
      %p79 = scmp.eq.s32.totalorder %s78, 0
      %s81 = sadd.s32 %s80, 1
      %s82 = scalar_select %p79, %s80, %s81
      %p85 = pneg %p79
      %p86 = scmp.eq.s32.totalorder %s17, 1
      %p87 = por %p85, %p86
      %p88 = scmp.ne.s32.totalorder %s80, %s83
      %p89 = scmp.eq.s32.totalorder %s17, 0
      %p90 = por %p88, %p89
      %p91 = scmp.ne.s32.totalorder %s80, %s83
      %p92 = scmp.eq.s32.totalorder %s22, 1
      %p93 = por %p91, %p92
      %p94 = scmp.ne.s32.totalorder %s83, %s84
      %p95 = scmp.eq.s32.totalorder %s22, 0
      %p96 = por %p94, %p95
      %p97 = scmp.ne.s32.totalorder %s83, %s84
      %p98 = scmp.eq.s32.totalorder %s23, 1
      %p99 = por %p97, %p98
      %p101 = scmp.ne.s32.totalorder %s84, %s100
      %p102 = scmp.eq.s32.totalorder %s23, 0
      %p103 = por %p101, %p102
      %s104 = ssub.s32 %s24, %s43
      %s105 = ssub.s32 %s25, %s39
      %s106 = sor.u32 %s104, %s105
      %p107 = scmp.eq.s32.totalorder %s106, 0
      %s109 = sadd.s32 %s108, 1
      %s110 = scalar_select %p107, %s108, %s109
      %p113 = pneg %p107
      %p114 = scmp.eq.s32.totalorder %s17, 1
      %p115 = por %p113, %p114
      %p116 = scmp.ne.s32.totalorder %s108, %s111
      %p117 = scmp.eq.s32.totalorder %s17, 0
      %p118 = por %p116, %p117
      %p119 = scmp.ne.s32.totalorder %s108, %s111
      %p120 = scmp.eq.s32.totalorder %s22, 1
      %p121 = por %p119, %p120
      %p122 = scmp.ne.s32.totalorder %s111, %s112
      %p123 = scmp.eq.s32.totalorder %s22, 0
      %p124 = por %p122, %p123
      %p125 = scmp.ne.s32.totalorder %s111, %s112
      %p126 = scmp.eq.s32.totalorder %s23, 1
      %p127 = por %p125, %p126
      %p129 = scmp.ne.s32.totalorder %s112, %s128
      %p130 = scmp.eq.s32.totalorder %s23, 0
      %p131 = por %p129, %p130
      %p132 = scmp.le.s32.totalorder 1, %s17
      %p133 = scmp.lt.s32.totalorder %s17, 3
      %p134 = pnand %p132, %p133
      %p135 = pneg %p134
      // Predicated region
      $region9: #{tpu_custom_call.1} parent=5 // pred_check
        _
      $region10: #{tpu_custom_call.1} parent=5 // pred_check_branch
        %137 = sbr.rel (%p134) target = $region12
      $region11: #{tpu_custom_call.1} parent=5 // pred_region
        %s138 = ssub.s32 %s17, 1
      $region12: #{tpu_custom_call.1} parent=5 // pred_fallthru
        _
      %p139 = scmp.lt.s32.totalorder %s17, 2
      // Predicated region
      $region13: #{tpu_custom_call.1} parent=5 // pred_check
        %p140 = pneg %p139
      $region14: #{tpu_custom_call.1} parent=5 // pred_check_branch
        %142 = sbr.rel (%p140) target = $region16
      $region15: #{tpu_custom_call.1} parent=5 // pred_region
        // Predicated region
        $region17: #{tpu_custom_call.1} parent=15 // pred_check
          %p143 = pneg %p60
        $region18: #{tpu_custom_call.1} parent=15 // pred_check_branch
          %145 = sbr.rel (%p143) target = $region20
        $region19: #{tpu_custom_call.1} parent=15 // pred_region
          %s146 = sand.u32 %s50, 1
          %s147 = scalar_lea.sflag [#allocation3], %s146
          %s148 = sand.u32 %s50, 1
          %s149 = smul.addr %s148, 8
          %s150 = scalar_lea.vmem [#allocation2], %s149
          %s151 = sadd.s32 %s25, %s26
          %s152 = smul.u32 2, %s151
          %s154 = ssub.s32 128, 128
          %155 = vsyncadd %s147, %s154
          %s156 = smul.addr %s24, 2
          %s157 = sadd.s32 %s152, %s156
          %s158 = smul.addr %s157, 64
          %s159 = scalar_lea.hbm %s0, %s158
          %s161 = sshll.u32 %s150, 4
          %s162 = int_to_ptr.vmem [resolvable:$true] %s161
          %164 = dma.hbm_to_vmem [thread:$0]  %s159, 128, %s162, %s147
        $region20: #{tpu_custom_call.1} parent=15 // pred_fallthru
          _
        // Predicated region
        $region21: #{tpu_custom_call.1} parent=15 // pred_check
          %p165 = pneg %p90
        $region22: #{tpu_custom_call.1} parent=15 // pred_check_branch
          %167 = sbr.rel (%p165) target = $region24
        $region23: #{tpu_custom_call.1} parent=15 // pred_region
          %s168 = sand.u32 %s80, 1
          %s169 = scalar_lea.sflag [#allocation6], %s168
          %s170 = sand.u32 %s80, 1
          %s171 = smul.addr %s170, 2
          %s172 = scalar_lea.vmem [#allocation5], %s171
          %s173 = sadd.s32 %s25, %s26
          %s174 = smul.u32 2, %s173
          %s176 = ssub.s32 32, 32
          %177 = vsyncadd %s169, %s176
          %s178 = smul.addr %s24, 2
          %s179 = sadd.s32 %s174, %s178
          %s180 = smul.addr %s179, 16
          %s181 = scalar_lea.hbm %s1, %s180
          %s183 = sshll.u32 %s172, 4
          %s184 = int_to_ptr.vmem [resolvable:$true] %s183
          %186 = dma.hbm_to_vmem [thread:$0]  %s181, 32, %s184, %s169
        $region24: #{tpu_custom_call.1} parent=15 // pred_fallthru
          _
      $region16: #{tpu_custom_call.1} parent=5 // pred_fallthru
        _
      %p187 = scmp.le.s32.totalorder 1, %s17
      %p188 = scmp.lt.s32.totalorder %s17, 3
      %p189 = pnand %p187, %p188
      %p190 = pneg %p189
      // Predicated region
      $region25: #{tpu_custom_call.1} parent=5 // pred_check
        _
      $region26: #{tpu_custom_call.1} parent=5 // pred_check_branch
        %192 = sbr.rel (%p189) target = $region28
      $region27: #{tpu_custom_call.1} parent=5 // pred_region
        %s193 = ssub.s32 %s17, 1
        %s194 = sand.u32 %s53, 1
        %s195 = scalar_lea.sflag [#allocation3], %s194
        %s196 = sand.u32 %s53, 1
        %s197 = smul.addr %s196, 8
        %s198 = scalar_lea.vmem [#allocation2], %s197
        // Predicated region
        $region29: #{tpu_custom_call.1} parent=27 // pred_check
          %p199 = pneg %p66
        $region30: #{tpu_custom_call.1} parent=27 // pred_check_branch
          %201 = sbr.rel (%p199) target = $region32
        $region31: #{tpu_custom_call.1} parent=27 // pred_region
          %202 = dma.done %s195, 128
        $region32: #{tpu_custom_call.1} parent=27 // pred_fallthru
          _
        %s203 = sand.u32 %s83, 1
        %s204 = scalar_lea.sflag [#allocation6], %s203
        %s205 = sand.u32 %s83, 1
        %s206 = smul.addr %s205, 2
        %s207 = scalar_lea.vmem [#allocation5], %s206
        // Predicated region
        $region33: #{tpu_custom_call.1} parent=27 // pred_check
          %p208 = pneg %p96
        $region34: #{tpu_custom_call.1} parent=27 // pred_check_branch
          %210 = sbr.rel (%p208) target = $region36
        $region35: #{tpu_custom_call.1} parent=27 // pred_region
          %211 = dma.done %s204, 32
        $region36: #{tpu_custom_call.1} parent=27 // pred_fallthru
          _
        %s212 = sand.u32 %s53, 1
        %s213 = scalar_lea.sflag [#allocation3], %s212
        %s214 = sand.u32 %s53, 1
        %s215 = smul.addr %s214, 8
        %s216 = scalar_lea.vmem [#allocation2], %s215
        %p217 = pneg %p66
        %p218 = pneg %p63
        %s219 = sand.u32 %s83, 1
        %s220 = scalar_lea.sflag [#allocation6], %s219
        %s221 = sand.u32 %s83, 1
        %s222 = smul.addr %s221, 2
        %s223 = scalar_lea.vmem [#allocation5], %s222
        %p224 = pneg %p96
        %p225 = pneg %p93
        %p226 = pneg %p124
        %p227 = pneg %p121
        %s228 = sand.u32 %s111, 1
        %s229 = scalar_lea.sflag [#allocation4], %s228
        %s230 = sand.u32 %s111, 1
        %s231 = smul.addr %s230, 4
        %s232 = scalar_lea.vmem [#allocation7], %s231
        %s233 = sadd.s32 %s28, %s29
        %s234 = smul.u32 2, %s233
        %s235 = sadd.s32 %s28, %s29
        %s236 = smul.u32 2, %s235
        %p237 = scmp.eq.s32.totalorder %s29, 0
        // Predicated region
        $region37: #{tpu_custom_call.1} parent=27 // pred_check
          %p238 = pneg %p237
        $region38: #{tpu_custom_call.1} parent=27 // pred_check_branch
          %240 = sbr.rel (%p238) target = $region40
        $region39: #{tpu_custom_call.1} parent=27 // pred_region
          %241 = vst [vmem:[%s232] sm:$0xf] 0.0
        $region40: #{tpu_custom_call.1} parent=27 // pred_fallthru
          _
        %v242 = vld [vmem:[%s198] sm:$0xff]
        %v243 = vld [vmem:[%s207] sm:$0x3]
        %v245 = vcombine.high %v242, %v242
        %vm247 = vcmask 1043456
        %v248 = vsel %vm247, %v242, -inf
        %v249 = vrot.slane %v248, 4
        %v250 = vmax.f32 %v248, %v249
        %v251 = vrot.slane %v250, 2
        %v252 = vmax.f32 %v250, %v251
        %v253 = vrot.slane %v252, 1
        %v254 = vmax.f32 %v252, %v253
        %v255 = vsel %vm247, %v245, -inf
        %v256 = vrot.slane %v255, 4
        %v257 = vmax.f32 %v255, %v256
        %v258 = vrot.slane %v257, 2
        %v259 = vmax.f32 %v257, %v258
        %v260 = vrot.slane %v259, 1
        %v261 = vmax.f32 %v259, %v260
        %v264 = vcombine.low %v254, %v261
        %v266 = vsub.f32 %v242, %v264
        %v267 = vmul.f32 %v266, 1.442695
        %v268 = vpow.pop %v267
        %v270 = vcombine.high %v268, %v268
        %v272 = vsel %vm247, %v268, 0.0
        %v273 = vrot.slane %v272, 4
        %v274 = vadd.f32 %v272, %v273
        %v275 = vrot.slane %v274, 2
        %v276 = vadd.f32 %v274, %v275
        %v277 = vrot.slane %v276, 1
        %v278 = vadd.f32 %v276, %v277
        %v279 = vsel %vm247, %v270, 0.0
        %v280 = vrot.slane %v279, 4
        %v281 = vadd.f32 %v279, %v280
        %v282 = vrot.slane %v281, 2
        %v283 = vadd.f32 %v281, %v282
        %v284 = vrot.slane %v283, 1
        %v285 = vadd.f32 %v283, %v284
        %v286 = vlog2.pop %v278
        %v287 = vmul.f32 %v286, 0.6931472
        %v288 = vlog2.pop %v285
        %v289 = vmul.f32 %v288, 0.6931472
        %v290 = vlaneseq
        %v291 = vshrl.u32 %v290, 7
        %v292 = vlaneseq
        %v293 = vshrl.u32 %v292, 7
        %v294 = vsub.s32 0, %v293
        %v295 = vrot.slane %v243, %v294
        %v296 = vlaneseq
        %v297 = vshrl.u32 %v296, 7
        %v298 = vsub.s32 1, %v297
        %v299 = vrot.slane %v243, %v298
        %vm300 = vcmp.eq.s32.totalorder %v291, %v295
        %vm301 = vcmp.eq.s32.totalorder %v291, %v299
        %v302 = vsel %vm300, 1, 0
        %v303 = vsel %vm301, 1, 0
        %v304 = vcvt.s32.f32 %v302
        %v305 = vcvt.s32.f32 %v303
        %v308 = vcombine.low %v304, %v305
        %v310 = vmul.f32 %v266, %v308
        %v312 = vcombine.high %v310, %v310
        %v314 = vsel %vm247, %v310, 0.0
        %v315 = vrot.slane %v314, 4
        %v316 = vadd.f32 %v314, %v315
        %v317 = vrot.slane %v316, 2
        %v318 = vadd.f32 %v316, %v317
        %v319 = vrot.slane %v318, 1
        %v320 = vadd.f32 %v318, %v319
        %v321 = vsel %vm247, %v312, 0.0
        %v322 = vrot.slane %v321, 4
        %v323 = vadd.f32 %v321, %v322
        %v324 = vrot.slane %v323, 2
        %v325 = vadd.f32 %v323, %v324
        %v326 = vrot.slane %v325, 1
        %v327 = vadd.f32 %v325, %v326
        %v328 = vsub.f32 %v287, %v320
        %v329 = vsub.f32 %v289, %v327
        %vm330 = vcmp.ne.s32.totalorder %v243, 4294967196
        %v331 = vsel %vm330, 1, 0
        %v332 = vcvt.s32.f32 %v331
        %v334 = vlaneseq
        %v335 = vshrl.u32 %v334, 7
        %v336 = vsub.s32 0, %v335
        %v337 = vrot.slane %v332, %v336
        %v338 = vlaneseq
        %v339 = vshrl.u32 %v338, 7
        %v340 = vsub.s32 1, %v339
        %v341 = vrot.slane %v332, %v340
        %v344 = vmul.f32 %v328, %v337
        %v345 = vmul.f32 %v329, %v341
        %v346 = vld [vmem:[%s232] ss:$2 sm:$0x3]
        %v349 = vcombine.low %v344, %v345
        %v351 = vunpack.c.l.s4 1966171168
        %v352 = vunpack.c.0.s8 %v351
        %v353 = vlaneseq
        %v354 = vshrl.u32 %v353, 7
        %v355 = vsub.s32 %v352, %v354
        %v356 = vrot.slane %v349, %v355
        %v358 = vunpack.c.l.s4 1966171168
        %v359 = vunpack.c.0.s8 %v358
        %v360 = vlaneseq
        %v361 = vshrl.u32 %v360, 7
        %v362 = vsub.s32 %v359, %v361
        %v363 = vrot.slane %v356, %v362
        %v365 = vadd.f32 %v346, %v363
        %v366 = vlaneseq
        %vm367 = vcmp.ge.s32.totalorder %v366, 0
        %vm368 = vcmp.lt.s32.totalorder %v366, 256
        %vm369 = vmand %vm367, %vm368
        %370 = vst.msk [vmem:[%s232] ss:$2 sm:$0x3] %vm369, %v365
        %s371 = scalar_lea.vmem %s232, 1 [#allocation7]
        %v372 = vld [vmem:[%s371] ss:$2 sm:$0x3]
        %v373 = vadd.f32 %v372, %v332
        %374 = vst.msk [vmem:[%s371] ss:$2 sm:$0x3] %vm369, %v373
        %s375 = sand.u32 %s111, 1
        %s376 = scalar_lea.sflag [#allocation4], %s375
        %s377 = sand.u32 %s111, 1
        %s378 = smul.addr %s377, 4
        %s379 = scalar_lea.vmem [#allocation7], %s378
        // Predicated region
        $region41: #{tpu_custom_call.1} parent=27 // pred_check
          %p380 = pneg %p121
        $region42: #{tpu_custom_call.1} parent=27 // pred_check_branch
          %382 = sbr.rel (%p380) target = $region44
        $region43: #{tpu_custom_call.1} parent=27 // pred_region
          %s384 = ssub.s32 64, 64
          %385 = vsyncadd %s376, %s384
          %s386 = smul.addr %s28, 2
          %s387 = smul.addr %s27, 2
          %s388 = sadd.s32 %s386, %s387
          %s389 = smul.addr %s388, 32
          %s390 = scalar_lea.hbm %s2, %s389
          %s392 = sshll.u32 %s379, 4
          %s393 = int_to_ptr.vmem [resolvable:$true] %s392
          %395 = dma.vmem_to_hbm [thread:$0]  %s393, 64, %s390, %s376
        $region44: #{tpu_custom_call.1} parent=27 // pred_fallthru
          _
      $region28: #{tpu_custom_call.1} parent=5 // pred_fallthru
        _
      %p396 = scmp.le.s32.totalorder 2, %s17
      // Predicated region
      $region45: #{tpu_custom_call.1} parent=5 // pred_check
        %p397 = pneg %p396
      $region46: #{tpu_custom_call.1} parent=5 // pred_check_branch
        %399 = sbr.rel (%p397) target = $region48
      $region47: #{tpu_custom_call.1} parent=5 // pred_region
        %s400 = ssub.s32 %s17, 2
        // Predicated region
        $region49: #{tpu_custom_call.1} parent=47 // pred_check
          %p401 = pneg %p127
        $region50: #{tpu_custom_call.1} parent=47 // pred_check_branch
          %403 = sbr.rel (%p401) target = $region52
        $region51: #{tpu_custom_call.1} parent=47 // pred_region
          %s404 = sand.u32 %s112, 1
          %s405 = scalar_lea.sflag [#allocation4], %s404
          %s406 = sand.u32 %s112, 1
          %s407 = smul.addr %s406, 4
          %s408 = scalar_lea.vmem [#allocation7], %s407
          %409 = dma.done %s405, 64
        $region52: #{tpu_custom_call.1} parent=47 // pred_fallthru
          _
      $region48: #{tpu_custom_call.1} parent=5 // pred_fallthru
        _
    $region6: #{tpu_custom_call.1} parent=1 // loop_footer
      %s21 = sadd.s32 1, %s17
    $region7: #{tpu_custom_call.1} parent=1 // loop_footer_branch
      %16 = sbr.rel target = $region3
    $region8: #{tpu_custom_call.1} parent=1 // loop_exit
      _
    %410 = vsyncpa [#allocation3], 1
    %s411 = scalar_lea.sflag [#allocation3], 1
    %412 = vsyncpa %s411, 1
    %413 = vsyncpa [#allocation6], 1
    %s414 = scalar_lea.sflag [#allocation6], 1
    %415 = vsyncpa %s414, 1
    %416 = vsyncpa [#allocation4], 1
    %s417 = scalar_lea.sflag [#allocation4], 1
    %418 = vsyncpa %s417, 1

</llo_original>
